<compile_context>
chip_gen: v6e
topology: v6e:2x2x1
jax: 0.10.0
libtpu: 0.0.40
codegen_flags: <defaults>
</compile_context>

<pallas_src>
import functools

import jax
import jax.numpy as jnp
from jax.experimental import pallas as pl
from jax.experimental.pallas import tpu as pltpu

IN_FEATURES = 4          # fc1 = nn.Linear(4, 128)
HIDDEN = 128
OUT_SUBLANES = 8         # n_actions padded up to one sublane group


def mlp_kernel(x_ref, w1_ref, b1_ref, w2_ref, b2_ref, w3_ref, b3_ref, o_ref):
    # Everything is carried transposed: features on sublanes, batch on lanes.
    #   x_T:  (4, TB)    f32        w1_T: (128, 4)   f32    b1_T: (128, 1) f32
    #   w2_T: (128, 128) f32/bf16   b2_T: (128, 1)   f32
    #   w3_T: (8, 128)   f32/bf16   b3_T: (8, 1)     f32    o_T:  (8, TB)  f32
    x_t = x_ref[...]
    w1_t = w1_ref[...]

    # ---- Layer 1 on the VPU (K=4 would waste the MXU): 4 FMAs.
    # x rows are sublane broadcasts (cheap); w1 columns are lane splats done
    # once per grid step on a tiny resident tensor.
    h1 = b1_ref[...]
    for k in range(x_ref.shape[0]):
        h1 = h1 + w1_t[:, k:k + 1] * x_t[k:k + 1, :]
    h1 = jnp.maximum(h1, 0.0)                      # (128, TB) f32

    # ---- Layer 2 on the MXU: h2_T = w2_T @ h1_T (f32 accumulation).
    h2 = jnp.dot(w2_ref[...], h1.astype(w2_ref.dtype),
                 preferred_element_type=jnp.float32) + b2_ref[...]
    h2 = jnp.maximum(h2, 0.0)                      # (128, TB) f32

    # ---- Layer 3 on the MXU: narrow (8, TB) output, n_actions in sublanes.
    out = jnp.dot(w3_ref[...], h2.astype(w3_ref.dtype),
                  preferred_element_type=jnp.float32) + b3_ref[...]
    o_ref[...] = out.astype(o_ref.dtype)


def prepare_params(params, *, precision="bf16"):
    """Transpose / pad / cast the weights ONCE (outside the hot path).

    precision: "bf16" -> layers 2/3 use bf16 matmul inputs (f32 accumulation);
               "f32"  -> everything f32 (exact vs the reference).
    """
    mm_dtype = jnp.bfloat16 if precision == "bf16" else jnp.float32
    w1, b1 = params["w1"], params["b1"]
    w2, b2 = params["w2"], params["b2"]
    w3, b3 = params["w3"], params["b3"]
    n_actions = w3.shape[1]

    w1_t = jnp.asarray(w1, jnp.float32).T                       # (128, 4)
    b1_t = jnp.asarray(b1, jnp.float32).reshape(HIDDEN, 1)      # (128, 1)
    w2_t = jnp.asarray(w2, jnp.float32).T.astype(mm_dtype)      # (128, 128)
    b2_t = jnp.asarray(b2, jnp.float32).reshape(HIDDEN, 1)      # (128, 1)
    w3_t = (jnp.zeros((OUT_SUBLANES, HIDDEN), jnp.float32)
            .at[:n_actions, :].set(jnp.asarray(w3, jnp.float32).T)
            .astype(mm_dtype))                                  # (8, 128)
    b3_t = (jnp.zeros((OUT_SUBLANES, 1), jnp.float32)
            .at[:n_actions, 0].set(jnp.asarray(b3, jnp.float32).reshape(-1)))
    return {"w1_t": w1_t, "b1_t": b1_t, "w2_t": w2_t, "b2_t": b2_t,
            "w3_t": w3_t, "b3_t": b3_t}


@functools.partial(jax.jit, static_argnames=("n_actions", "block_b"))
def neural_network_forward(x, prep, *, n_actions, block_b=1024):
    """x: (B, 4) float32. prep: output of prepare_params. Returns (B, n_actions)."""
    B = x.shape[0]

    # Lane-dense transposed input: (4, B).
    x_t = x.T

    # Batch tiling: lane axis -> tile must be a multiple of 128; pad B up to a
    # whole number of tiles so every grid step sees a full block.
    tb = min(block_b, max(B, 1))
    tb = max(128, ((tb + 127) // 128) * 128)
    b_pad = pl.cdiv(B, tb) * tb
    if b_pad != B:
        x_t = jnp.pad(x_t, ((0, 0), (0, b_pad - B)))
    grid_b = b_pad // tb

    resident = lambda a: pl.BlockSpec(a.shape, lambda i: (0, 0))

    out_t = pl.pallas_call(
        mlp_kernel,
        out_shape=jax.ShapeDtypeStruct((OUT_SUBLANES, b_pad), jnp.float32),
        grid=(grid_b,),
        in_specs=[
            pl.BlockSpec((IN_FEATURES, tb), lambda i: (0, i)),   # x streams
            resident(prep["w1_t"]), resident(prep["b1_t"]),
            resident(prep["w2_t"]), resident(prep["b2_t"]),
            resident(prep["w3_t"]), resident(prep["b3_t"]),
        ],
        out_specs=pl.BlockSpec((OUT_SUBLANES, tb), lambda i: (0, i)),
        compiler_params=pltpu.CompilerParams(
            dimension_semantics=("parallel",),  # megacore when grid_b >= 2
        ),
    )(x_t, prep["w1_t"], prep["b1_t"], prep["w2_t"], prep["b2_t"],
      prep["w3_t"], prep["b3_t"])

    # Narrow slab: only 8 * 4 B per batch element leaves the kernel.
    return out_t[:n_actions, :B].T


def init_params(key, in_features=IN_FEATURES, hidden=HIDDEN, n_actions=2):
    """Deterministic synthetic parameters (Kaiming-uniform-ish, like nn.Linear)."""
    ks = jax.random.split(key, 6)

    def linear_init(kw, kb, fan_in, fan_out):
        bound = 1.0 / jnp.sqrt(fan_in)
        w = jax.random.uniform(kw, (fan_in, fan_out), jnp.float32, -bound, bound)
        b = jax.random.uniform(kb, (1, fan_out), jnp.float32, -bound, bound)
        return w, b

    w1, b1 = linear_init(ks[0], ks[1], in_features, hidden)
    w2, b2 = linear_init(ks[2], ks[3], hidden, hidden)
    w3, b3 = linear_init(ks[4], ks[5], hidden, n_actions)
    return {"w1": w1, "b1": b1, "w2": w2, "b2": b2, "w3": w3, "b3": b3}


def reference_forward(x, p):
    h1 = jnp.maximum(x @ p["w1"] + p["b1"], 0.0)
    h2 = jnp.maximum(h1 @ p["w2"] + p["b2"], 0.0)
    return h2 @ p["w3"] + p["b3"]


if __name__ == "__main__":
    key = jax.random.PRNGKey(0)
    k_x, k_x2, k_p = jax.random.split(key, 3)

    B, N_ACTIONS = 8, 2
    x = jax.random.normal(k_x, (B, IN_FEATURES), jnp.float32)
    params = init_params(k_p, in_features=IN_FEATURES, hidden=HIDDEN, n_actions=N_ACTIONS)
    ref = reference_forward(x, params)

    prep_f32 = prepare_params(params, precision="f32")
    prep_bf16 = prepare_params(params, precision="bf16")   # production default

    # Exact f32 path.
    out_f32 = jax.block_until_ready(
        neural_network_forward(x, prep_f32, n_actions=N_ACTIONS))
    assert out_f32.shape == (B, N_ACTIONS)
    assert jnp.allclose(out_f32, ref, atol=1e-5, rtol=1e-5), "f32 mismatch vs reference"

    # bf16 matmul-input path (full-rate MXU on v5e/v6e/v7x).
    out_bf16 = jax.block_until_ready(
        neural_network_forward(x, prep_bf16, n_actions=N_ACTIONS))
    assert out_bf16.shape == (B, N_ACTIONS)
    assert jnp.allclose(out_bf16, ref, atol=5e-2, rtol=5e-2), "bf16 mismatch vs reference"

    # Larger, non-tile-multiple batch to exercise the batch grid + padding path.
    B2 = 300
    x2 = jax.random.normal(k_x2, (B2, IN_FEATURES), jnp.float32)
    ref2 = reference_forward(x2, params)
    out2 = jax.block_until_ready(
        neural_network_forward(x2, prep_f32, n_actions=N_ACTIONS))
    assert out2.shape == (B2, N_ACTIONS)
    assert jnp.allclose(out2, ref2, atol=1e-5, rtol=1e-5), "batched f32 mismatch vs reference"

    print("KERNEL_OK")
</pallas_src>

<mosaic_0001>
module attributes {stable_mosaic.version = 11 : i64} {
  func.func @mlp_kernel(%arg0: i32, %arg1: memref<4x128xf32, #tpu.memory_space<vmem>>, %arg2: memref<128x4xf32, #tpu.memory_space<vmem>>, %arg3: memref<128x1xf32, #tpu.memory_space<vmem>>, %arg4: memref<128x128xf32, #tpu.memory_space<vmem>>, %arg5: memref<128x1xf32, #tpu.memory_space<vmem>>, %arg6: memref<8x128xf32, #tpu.memory_space<vmem>>, %arg7: memref<8x1xf32, #tpu.memory_space<vmem>>, %arg8: memref<8x128xf32, #tpu.memory_space<vmem>>) attributes {dimension_semantics = [#tpu.dimension_semantics<parallel>], iteration_bounds = array<i64: 1>, scalar_prefetch = 0 : i64, scratch_operands = 0 : i64, tpu.core_type = #tpu.core_type<tc>, window_params = [{transform_indices = @transform_0, window_bounds = array<i64: 4, 128>}, {pipeline_mode = #tpu.pipeline_mode<synchronous>, transform_indices = @transform_1, window_bounds = array<i64: 128, 4>}, {pipeline_mode = #tpu.pipeline_mode<synchronous>, transform_indices = @transform_2, window_bounds = array<i64: 128, 1>}, {pipeline_mode = #tpu.pipeline_mode<synchronous>, transform_indices = @transform_3, window_bounds = array<i64: 128, 128>}, {pipeline_mode = #tpu.pipeline_mode<synchronous>, transform_indices = @transform_4, window_bounds = array<i64: 128, 1>}, {pipeline_mode = #tpu.pipeline_mode<synchronous>, transform_indices = @transform_5, window_bounds = array<i64: 8, 128>}, {pipeline_mode = #tpu.pipeline_mode<synchronous>, transform_indices = @transform_6, window_bounds = array<i64: 8, 1>}, {transform_indices = @transform_7, window_bounds = array<i64: 8, 128>}]} {
    %c0 = arith.constant 0 : index
    %c0_0 = arith.constant 0 : index
    %0 = vector.load %arg1[%c0, %c0_0] : memref<4x128xf32, #tpu.memory_space<vmem>>, vector<4x128xf32>
    %c0_1 = arith.constant 0 : index
    %c0_2 = arith.constant 0 : index
    %1 = vector.load %arg2[%c0_1, %c0_2] : memref<128x4xf32, #tpu.memory_space<vmem>>, vector<128x4xf32>
    %c0_3 = arith.constant 0 : index
    %c0_4 = arith.constant 0 : index
    %2 = vector.load %arg3[%c0_3, %c0_4] : memref<128x1xf32, #tpu.memory_space<vmem>>, vector<128x1xf32>
    %3 = vector.extract_strided_slice %1 {offsets = [0, 0], sizes = [128, 1], strides = [1, 1]} : vector<128x4xf32> to vector<128x1xf32>
    %4 = vector.extract_strided_slice %0 {offsets = [0, 0], sizes = [1, 128], strides = [1, 1]} : vector<4x128xf32> to vector<1x128xf32>
    %5 = vector.broadcast %3 : vector<128x1xf32> to vector<128x128xf32>
    %6 = vector.broadcast %4 : vector<1x128xf32> to vector<128x128xf32>
    %7 = arith.mulf %5, %6 : vector<128x128xf32>
    %8 = vector.broadcast %2 : vector<128x1xf32> to vector<128x128xf32>
    %9 = arith.addf %8, %7 : vector<128x128xf32>
    %10 = vector.extract_strided_slice %1 {offsets = [0, 1], sizes = [128, 1], strides = [1, 1]} : vector<128x4xf32> to vector<128x1xf32>
    %11 = vector.extract_strided_slice %0 {offsets = [1, 0], sizes = [1, 128], strides = [1, 1]} : vector<4x128xf32> to vector<1x128xf32>
    %12 = vector.broadcast %10 : vector<128x1xf32> to vector<128x128xf32>
    %13 = vector.broadcast %11 : vector<1x128xf32> to vector<128x128xf32>
    %14 = arith.mulf %12, %13 : vector<128x128xf32>
    %15 = arith.addf %9, %14 : vector<128x128xf32>
    %16 = vector.extract_strided_slice %1 {offsets = [0, 2], sizes = [128, 1], strides = [1, 1]} : vector<128x4xf32> to vector<128x1xf32>
    %17 = vector.extract_strided_slice %0 {offsets = [2, 0], sizes = [1, 128], strides = [1, 1]} : vector<4x128xf32> to vector<1x128xf32>
    %18 = vector.broadcast %16 : vector<128x1xf32> to vector<128x128xf32>
    %19 = vector.broadcast %17 : vector<1x128xf32> to vector<128x128xf32>
    %20 = arith.mulf %18, %19 : vector<128x128xf32>
    %21 = arith.addf %15, %20 : vector<128x128xf32>
    %22 = vector.extract_strided_slice %1 {offsets = [0, 3], sizes = [128, 1], strides = [1, 1]} : vector<128x4xf32> to vector<128x1xf32>
    %23 = vector.extract_strided_slice %0 {offsets = [3, 0], sizes = [1, 128], strides = [1, 1]} : vector<4x128xf32> to vector<1x128xf32>
    %24 = vector.broadcast %22 : vector<128x1xf32> to vector<128x128xf32>
    %25 = vector.broadcast %23 : vector<1x128xf32> to vector<128x128xf32>
    %26 = arith.mulf %24, %25 : vector<128x128xf32>
    %27 = arith.addf %21, %26 : vector<128x128xf32>
    %cst = arith.constant 0.000000e+00 : f32
    %28 = vector.broadcast %cst : f32 to vector<128x128xf32>
    %29 = arith.maximumf %27, %28 : vector<128x128xf32>
    %c0_5 = arith.constant 0 : index
    %c0_6 = arith.constant 0 : index
    %30 = vector.load %arg4[%c0_5, %c0_6] : memref<128x128xf32, #tpu.memory_space<vmem>>, vector<128x128xf32>
    %cst_7 = arith.constant dense<0.000000e+00> : vector<128x128xf32>
    %31 = tpu.matmul %30, %29, %cst_7 {dimension_numbers = #tpu.dot_dimension_numbers<[1], [0], [0], [1], [0, 0, 1, 1], [], []>} : vector<128x128xf32>, vector<128x128xf32>, vector<128x128xf32> -> vector<128x128xf32>
    %c0_8 = arith.constant 0 : index
    %c0_9 = arith.constant 0 : index
    %32 = vector.load %arg5[%c0_8, %c0_9] : memref<128x1xf32, #tpu.memory_space<vmem>>, vector<128x1xf32>
    %33 = vector.broadcast %32 : vector<128x1xf32> to vector<128x128xf32>
    %34 = arith.addf %31, %33 : vector<128x128xf32>
    %cst_10 = arith.constant 0.000000e+00 : f32
    %35 = vector.broadcast %cst_10 : f32 to vector<128x128xf32>
    %36 = arith.maximumf %34, %35 : vector<128x128xf32>
    %c0_11 = arith.constant 0 : index
    %c0_12 = arith.constant 0 : index
    %37 = vector.load %arg6[%c0_11, %c0_12] : memref<8x128xf32, #tpu.memory_space<vmem>>, vector<8x128xf32>
    %cst_13 = arith.constant dense<0.000000e+00> : vector<8x128xf32>
    %38 = tpu.matmul %37, %36, %cst_13 {dimension_numbers = #tpu.dot_dimension_numbers<[1], [0], [0], [1], [0, 0, 1, 1], [], []>} : vector<8x128xf32>, vector<128x128xf32>, vector<8x128xf32> -> vector<8x128xf32>
    %c0_14 = arith.constant 0 : index
    %c0_15 = arith.constant 0 : index
    %39 = vector.load %arg7[%c0_14, %c0_15] : memref<8x1xf32, #tpu.memory_space<vmem>>, vector<8x1xf32>
    %40 = vector.broadcast %39 : vector<8x1xf32> to vector<8x128xf32>
    %41 = arith.addf %38, %40 : vector<8x128xf32>
    %c0_16 = arith.constant 0 : index
    %c0_17 = arith.constant 0 : index
    %42 = vector.load %arg8[%c0_16, %c0_17] : memref<8x128xf32, #tpu.memory_space<vmem>>, vector<8x128xf32>
    tpu.vector_store %arg8[%c0_16, %c0_17], %41 {strides = array<i32>} : memref<8x128xf32, #tpu.memory_space<vmem>>, vector<8x128xf32>,
    return
  }
  func.func @transform_0(%arg0: i32) -> (i32, i32) {
    %c0_i32 = arith.constant 0 : i32
    %c0_i32_0 = arith.constant 0 : i32
    return %c0_i32, %arg0 : i32, i32
  }
  func.func @transform_1(%arg0: i32) -> (i32, i32) {
    %c0_i32 = arith.constant 0 : i32
    %c0_i32_0 = arith.constant 0 : i32
    %c0_i32_1 = arith.constant 0 : i32
    return %c0_i32, %c0_i32_0 : i32, i32
  }
  func.func @transform_2(%arg0: i32) -> (i32, i32) {
    %c0_i32 = arith.constant 0 : i32
    %c0_i32_0 = arith.constant 0 : i32
    %c0_i32_1 = arith.constant 0 : i32
    return %c0_i32, %c0_i32_0 : i32, i32
  }
  func.func @transform_3(%arg0: i32) -> (i32, i32) {
    %c0_i32 = arith.constant 0 : i32
    %c0_i32_0 = arith.constant 0 : i32
    %c0_i32_1 = arith.constant 0 : i32
    return %c0_i32, %c0_i32_0 : i32, i32
  }
  func.func @transform_4(%arg0: i32) -> (i32, i32) {
    %c0_i32 = arith.constant 0 : i32
    %c0_i32_0 = arith.constant 0 : i32
    %c0_i32_1 = arith.constant 0 : i32
    return %c0_i32, %c0_i32_0 : i32, i32
  }
  func.func @transform_5(%arg0: i32) -> (i32, i32) {
    %c0_i32 = arith.constant 0 : i32
    %c0_i32_0 = arith.constant 0 : i32
    %c0_i32_1 = arith.constant 0 : i32
    return %c0_i32, %c0_i32_0 : i32, i32
  }
  func.func @transform_6(%arg0: i32) -> (i32, i32) {
    %c0_i32 = arith.constant 0 : i32
    %c0_i32_0 = arith.constant 0 : i32
    %c0_i32_1 = arith.constant 0 : i32
    return %c0_i32, %c0_i32_0 : i32, i32
  }
  func.func @transform_7(%arg0: i32) -> (i32, i32) {
    %c0_i32 = arith.constant 0 : i32
    %c0_i32_0 = arith.constant 0 : i32
    return %c0_i32, %arg0 : i32, i32
  }
}

</mosaic_0001>

<llo_original>
// kernel: neural_network_forward.1
$region0: #{neural_network_forward.1}
  #allocation0 [shape = 'u32[]', space=smem, size = 0x4, offset = 0x4, fixed_abs, tag = 'smem constant byte address 0x4 - core index']
  #allocation1 [shape = 'u32[144,128]{1,0:T(1,128)}', space=vmem, size = 0x12000, scoped, tag = 'internal scratch']
  %s0 = inlined_call_operand.vmem [shape: f32[4,128], index: 0, kind: input, shape index: {}]
  %s1 = inlined_call_operand.vmem [shape: f32[128,4], index: 1, kind: input, shape index: {}]
  %s2 = inlined_call_operand.vmem [shape: f32[128,1], index: 2, kind: input, shape index: {}]
  %s3 = inlined_call_operand.vmem [shape: f32[128,128], index: 3, kind: input, shape index: {}]
  %s4 = inlined_call_operand.vmem [shape: f32[128,1], index: 4, kind: input, shape index: {}]
  %s5 = inlined_call_operand.vmem [shape: f32[8,128], index: 5, kind: input, shape index: {}]
  %s6 = inlined_call_operand.vmem [shape: f32[8,1], index: 6, kind: input, shape index: {}]
  %s7 = inlined_call_operand.vmem [shape: f32[8,128], index: 7, kind: output, shape index: {}]
  %s8 = sld [smem:[#allocation0]]
  $region38: #{neural_network_forward.1} parent=0
    _
  %s10 = ssub.s32 1, %s8
  %s11 = scalar_select 0, %s10, %s8
  // Predicated region
  $region2: #{neural_network_forward.1} parent=0 // pred_check
    _
  $region3: #{neural_network_forward.1} parent=0 // pred_check_branch
    %13 = sbr.rel (0) target = $region5
  $region4: #{neural_network_forward.1} parent=0 // pred_region
    _
  $region5: #{neural_network_forward.1} parent=0 // pred_fallthru
    _
  // Predicated region
  $region6: #{neural_network_forward.1} parent=0 // pred_check
    _
  $region7: #{neural_network_forward.1} parent=0 // pred_check_branch
    %15 = sbr.rel (0) target = $region9
  $region8: #{neural_network_forward.1} parent=0 // pred_region
    _
  $region9: #{neural_network_forward.1} parent=0 // pred_fallthru
    _
  // Predicated region
  $region10: #{neural_network_forward.1} parent=0 // pred_check
    _
  $region11: #{neural_network_forward.1} parent=0 // pred_check_branch
    %17 = sbr.rel (0) target = $region13
  $region12: #{neural_network_forward.1} parent=0 // pred_region
    _
  $region13: #{neural_network_forward.1} parent=0 // pred_fallthru
    _
  // Predicated region
  $region14: #{neural_network_forward.1} parent=0 // pred_check
    _
  $region15: #{neural_network_forward.1} parent=0 // pred_check_branch
    %19 = sbr.rel (0) target = $region17
  $region16: #{neural_network_forward.1} parent=0 // pred_region
    _
  $region17: #{neural_network_forward.1} parent=0 // pred_fallthru
    _
  // Predicated region
  $region18: #{neural_network_forward.1} parent=0 // pred_check
    _
  $region19: #{neural_network_forward.1} parent=0 // pred_check_branch
    %21 = sbr.rel (0) target = $region21
  $region20: #{neural_network_forward.1} parent=0 // pred_region
    _
  $region21: #{neural_network_forward.1} parent=0 // pred_fallthru
    _
  // Predicated region
  $region22: #{neural_network_forward.1} parent=0 // pred_check
    _
  $region23: #{neural_network_forward.1} parent=0 // pred_check_branch
    %23 = sbr.rel (0) target = $region25
  $region24: #{neural_network_forward.1} parent=0 // pred_region
    _
  $region25: #{neural_network_forward.1} parent=0 // pred_fallthru
    _
  // Predicated region
  $region26: #{neural_network_forward.1} parent=0 // pred_check
    _
  $region27: #{neural_network_forward.1} parent=0 // pred_check_branch
    %25 = sbr.rel (0) target = $region29
  $region28: #{neural_network_forward.1} parent=0 // pred_region
    _
  $region29: #{neural_network_forward.1} parent=0 // pred_fallthru
    _
  %v26 = vld [vmem:[%s0] sm:$0xf]
  %v27 = vld [vmem:[%s1] sm:$0xff]
  %v28 = vld [vmem:[%s1 + $0x8] sm:$0xff]
  %v29 = vld [vmem:[%s1 + $0x10] sm:$0xff]
  %v30 = vld [vmem:[%s1 + $0x18] sm:$0xff]
  %v31 = vld [vmem:[%s1 + $0x20] sm:$0xff]
  %v32 = vld [vmem:[%s1 + $0x28] sm:$0xff]
  %v33 = vld [vmem:[%s1 + $0x30] sm:$0xff]
  %v34 = vld [vmem:[%s1 + $0x38] sm:$0xff]
  %v35 = vld [vmem:[%s1 + $0x40] sm:$0xff]
  %v36 = vld [vmem:[%s1 + $0x48] sm:$0xff]
  %v37 = vld [vmem:[%s1 + $0x50] sm:$0xff]
  %v38 = vld [vmem:[%s1 + $0x58] sm:$0xff]
  %v39 = vld [vmem:[%s1 + $0x60] sm:$0xff]
  %v40 = vld [vmem:[%s1 + $0x68] sm:$0xff]
  %v41 = vld [vmem:[%s1 + $0x70] sm:$0xff]
  %v42 = vld [vmem:[%s1 + $0x78] sm:$0xff]
  %v43 = vld [vmem:[%s2] sm:$0xff]
  %v44 = vld [vmem:[%s2 + $0x8] sm:$0xff]
  %v45 = vld [vmem:[%s2 + $0x10] sm:$0xff]
  %v46 = vld [vmem:[%s2 + $0x18] sm:$0xff]
  %v47 = vld [vmem:[%s2 + $0x20] sm:$0xff]
  %v48 = vld [vmem:[%s2 + $0x28] sm:$0xff]
  %v49 = vld [vmem:[%s2 + $0x30] sm:$0xff]
  %v50 = vld [vmem:[%s2 + $0x38] sm:$0xff]
  %v51 = vld [vmem:[%s2 + $0x40] sm:$0xff]
  %v52 = vld [vmem:[%s2 + $0x48] sm:$0xff]
  %v53 = vld [vmem:[%s2 + $0x50] sm:$0xff]
  %v54 = vld [vmem:[%s2 + $0x58] sm:$0xff]
  %v55 = vld [vmem:[%s2 + $0x60] sm:$0xff]
  %v56 = vld [vmem:[%s2 + $0x68] sm:$0xff]
  %v57 = vld [vmem:[%s2 + $0x70] sm:$0xff]
  %v58 = vld [vmem:[%s2 + $0x78] sm:$0xff]
  %60 = vset.pattern.permute.xlu0 0
  %61 = vperm.xlu0 %60, %v27
  %v62 = vpop.permute.xlu0 %61
  %65 = vset.pattern.permute.xlu0 0
  %66 = vperm.xlu0 %65, %v28
  %v67 = vpop.permute.xlu0 %66
  %70 = vset.pattern.permute.xlu0 0
  %71 = vperm.xlu0 %70, %v29
  %v72 = vpop.permute.xlu0 %71
  %75 = vset.pattern.permute.xlu0 0
  %76 = vperm.xlu0 %75, %v30
  %v77 = vpop.permute.xlu0 %76
  %80 = vset.pattern.permute.xlu0 0
  %81 = vperm.xlu0 %80, %v31
  %v82 = vpop.permute.xlu0 %81
  %85 = vset.pattern.permute.xlu0 0
  %86 = vperm.xlu0 %85, %v32
  %v87 = vpop.permute.xlu0 %86
  %90 = vset.pattern.permute.xlu0 0
  %91 = vperm.xlu0 %90, %v33
  %v92 = vpop.permute.xlu0 %91
  %95 = vset.pattern.permute.xlu0 0
  %96 = vperm.xlu0 %95, %v34
  %v97 = vpop.permute.xlu0 %96
  %100 = vset.pattern.permute.xlu0 0
  %101 = vperm.xlu0 %100, %v35
  %v102 = vpop.permute.xlu0 %101
  %105 = vset.pattern.permute.xlu0 0
  %106 = vperm.xlu0 %105, %v36
  %v107 = vpop.permute.xlu0 %106
  %110 = vset.pattern.permute.xlu0 0
  %111 = vperm.xlu0 %110, %v37
  %v112 = vpop.permute.xlu0 %111
  %115 = vset.pattern.permute.xlu0 0
  %116 = vperm.xlu0 %115, %v38
  %v117 = vpop.permute.xlu0 %116
  %120 = vset.pattern.permute.xlu0 0
  %121 = vperm.xlu0 %120, %v39
  %v122 = vpop.permute.xlu0 %121
  %125 = vset.pattern.permute.xlu0 0
  %126 = vperm.xlu0 %125, %v40
  %v127 = vpop.permute.xlu0 %126
  %130 = vset.pattern.permute.xlu0 0
  %131 = vperm.xlu0 %130, %v41
  %v132 = vpop.permute.xlu0 %131
  %135 = vset.pattern.permute.xlu0 0
  %136 = vperm.xlu0 %135, %v42
  %v137 = vpop.permute.xlu0 %136
  %v139 = vlaneseq
  %v140 = vshrl.u32 %v139, 7
  %v141 = vsub.s32 0, %v140
  %v142 = vrot.slane %v26, %v141
  %v143 = vmul.f32 %v62, %v142
  %v144 = vmul.f32 %v67, %v142
  %v145 = vmul.f32 %v72, %v142
  %v146 = vmul.f32 %v77, %v142
  %v147 = vmul.f32 %v82, %v142
  %v148 = vmul.f32 %v87, %v142
  %v149 = vmul.f32 %v92, %v142
  %v150 = vmul.f32 %v97, %v142
  %v151 = vmul.f32 %v102, %v142
  %v152 = vmul.f32 %v107, %v142
  %v153 = vmul.f32 %v112, %v142
  %v154 = vmul.f32 %v117, %v142
  %v155 = vmul.f32 %v122, %v142
  %v156 = vmul.f32 %v127, %v142
  %v157 = vmul.f32 %v132, %v142
  %v158 = vmul.f32 %v137, %v142
  %160 = vset.pattern.permute.xlu0 0
  %161 = vperm.xlu0 %160, %v43
  %v162 = vpop.permute.xlu0 %161
  %165 = vset.pattern.permute.xlu0 0
  %166 = vperm.xlu0 %165, %v44
  %v167 = vpop.permute.xlu0 %166
  %170 = vset.pattern.permute.xlu0 0
  %171 = vperm.xlu0 %170, %v45
  %v172 = vpop.permute.xlu0 %171
  %175 = vset.pattern.permute.xlu0 0
  %176 = vperm.xlu0 %175, %v46
  %v177 = vpop.permute.xlu0 %176
  %180 = vset.pattern.permute.xlu0 0
  %181 = vperm.xlu0 %180, %v47
  %v182 = vpop.permute.xlu0 %181
  %185 = vset.pattern.permute.xlu0 0
  %186 = vperm.xlu0 %185, %v48
  %v187 = vpop.permute.xlu0 %186
  %190 = vset.pattern.permute.xlu0 0
  %191 = vperm.xlu0 %190, %v49
  %v192 = vpop.permute.xlu0 %191
  %195 = vset.pattern.permute.xlu0 0
  %196 = vperm.xlu0 %195, %v50
  %v197 = vpop.permute.xlu0 %196
  %200 = vset.pattern.permute.xlu0 0
  %201 = vperm.xlu0 %200, %v51
  %v202 = vpop.permute.xlu0 %201
  %205 = vset.pattern.permute.xlu0 0
  %206 = vperm.xlu0 %205, %v52
  %v207 = vpop.permute.xlu0 %206
  %210 = vset.pattern.permute.xlu0 0
  %211 = vperm.xlu0 %210, %v53
  %v212 = vpop.permute.xlu0 %211
  %215 = vset.pattern.permute.xlu0 0
  %216 = vperm.xlu0 %215, %v54
  %v217 = vpop.permute.xlu0 %216
  %220 = vset.pattern.permute.xlu0 0
  %221 = vperm.xlu0 %220, %v55
  %v222 = vpop.permute.xlu0 %221
  %225 = vset.pattern.permute.xlu0 0
  %226 = vperm.xlu0 %225, %v56
  %v227 = vpop.permute.xlu0 %226
  %230 = vset.pattern.permute.xlu0 0
  %231 = vperm.xlu0 %230, %v57
  %v232 = vpop.permute.xlu0 %231
  %235 = vset.pattern.permute.xlu0 0
  %236 = vperm.xlu0 %235, %v58
  %v237 = vpop.permute.xlu0 %236
  %v239 = vadd.f32 %v162, %v143
  %v240 = vadd.f32 %v167, %v144
  %v241 = vadd.f32 %v172, %v145
  %v242 = vadd.f32 %v177, %v146
  %v243 = vadd.f32 %v182, %v147
  %v244 = vadd.f32 %v187, %v148
  %v245 = vadd.f32 %v192, %v149
  %v246 = vadd.f32 %v197, %v150
  %v247 = vadd.f32 %v202, %v151
  %v248 = vadd.f32 %v207, %v152
  %v249 = vadd.f32 %v212, %v153
  %v250 = vadd.f32 %v217, %v154
  %v251 = vadd.f32 %v222, %v155
  %v252 = vadd.f32 %v227, %v156
  %v253 = vadd.f32 %v232, %v157
  %v254 = vadd.f32 %v237, %v158
  %255 = vset.pattern.permute.xlu0 1
  %256 = vperm.xlu0 %255, %v27
  %v257 = vpop.permute.xlu0 %256
  %259 = vset.pattern.permute.xlu0 1
  %260 = vperm.xlu0 %259, %v28
  %v261 = vpop.permute.xlu0 %260
  %263 = vset.pattern.permute.xlu0 1
  %264 = vperm.xlu0 %263, %v29
  %v265 = vpop.permute.xlu0 %264
  %267 = vset.pattern.permute.xlu0 1
  %268 = vperm.xlu0 %267, %v30
  %v269 = vpop.permute.xlu0 %268
  %271 = vset.pattern.permute.xlu0 1
  %272 = vperm.xlu0 %271, %v31
  %v273 = vpop.permute.xlu0 %272
  %275 = vset.pattern.permute.xlu0 1
  %276 = vperm.xlu0 %275, %v32
  %v277 = vpop.permute.xlu0 %276
  %279 = vset.pattern.permute.xlu0 1
  %280 = vperm.xlu0 %279, %v33
  %v281 = vpop.permute.xlu0 %280
  %283 = vset.pattern.permute.xlu0 1
  %284 = vperm.xlu0 %283, %v34
  %v285 = vpop.permute.xlu0 %284
  %287 = vset.pattern.permute.xlu0 1
  %288 = vperm.xlu0 %287, %v35
  %v289 = vpop.permute.xlu0 %288
  %291 = vset.pattern.permute.xlu0 1
  %292 = vperm.xlu0 %291, %v36
  %v293 = vpop.permute.xlu0 %292
  %295 = vset.pattern.permute.xlu0 1
  %296 = vperm.xlu0 %295, %v37
  %v297 = vpop.permute.xlu0 %296
  %299 = vset.pattern.permute.xlu0 1
  %300 = vperm.xlu0 %299, %v38
  %v301 = vpop.permute.xlu0 %300
  %303 = vset.pattern.permute.xlu0 1
  %304 = vperm.xlu0 %303, %v39
  %v305 = vpop.permute.xlu0 %304
  %307 = vset.pattern.permute.xlu0 1
  %308 = vperm.xlu0 %307, %v40
  %v309 = vpop.permute.xlu0 %308
  %311 = vset.pattern.permute.xlu0 1
  %312 = vperm.xlu0 %311, %v41
  %v313 = vpop.permute.xlu0 %312
  %315 = vset.pattern.permute.xlu0 1
  %316 = vperm.xlu0 %315, %v42
  %v317 = vpop.permute.xlu0 %316
  %v319 = vlaneseq
  %v320 = vshrl.u32 %v319, 7
  %v321 = vsub.s32 1, %v320
  %v322 = vrot.slane %v26, %v321
  %v323 = vmul.f32 %v257, %v322
  %v324 = vmul.f32 %v261, %v322
  %v325 = vmul.f32 %v265, %v322
  %v326 = vmul.f32 %v269, %v322
  %v327 = vmul.f32 %v273, %v322
  %v328 = vmul.f32 %v277, %v322
  %v329 = vmul.f32 %v281, %v322
  %v330 = vmul.f32 %v285, %v322
  %v331 = vmul.f32 %v289, %v322
  %v332 = vmul.f32 %v293, %v322
  %v333 = vmul.f32 %v297, %v322
  %v334 = vmul.f32 %v301, %v322
  %v335 = vmul.f32 %v305, %v322
  %v336 = vmul.f32 %v309, %v322
  %v337 = vmul.f32 %v313, %v322
  %v338 = vmul.f32 %v317, %v322
  %v339 = vadd.f32 %v239, %v323
  %v340 = vadd.f32 %v240, %v324
  %v341 = vadd.f32 %v241, %v325
  %v342 = vadd.f32 %v242, %v326
  %v343 = vadd.f32 %v243, %v327
  %v344 = vadd.f32 %v244, %v328
  %v345 = vadd.f32 %v245, %v329
  %v346 = vadd.f32 %v246, %v330
  %v347 = vadd.f32 %v247, %v331
  %v348 = vadd.f32 %v248, %v332
  %v349 = vadd.f32 %v249, %v333
  %v350 = vadd.f32 %v250, %v334
  %v351 = vadd.f32 %v251, %v335
  %v352 = vadd.f32 %v252, %v336
  %v353 = vadd.f32 %v253, %v337
  %v354 = vadd.f32 %v254, %v338
  %355 = vset.pattern.permute.xlu0 2
  %356 = vperm.xlu0 %355, %v27
  %v357 = vpop.permute.xlu0 %356
  %359 = vset.pattern.permute.xlu0 2
  %360 = vperm.xlu0 %359, %v28
  %v361 = vpop.permute.xlu0 %360
  %363 = vset.pattern.permute.xlu0 2
  %364 = vperm.xlu0 %363, %v29
  %v365 = vpop.permute.xlu0 %364
  %367 = vset.pattern.permute.xlu0 2
  %368 = vperm.xlu0 %367, %v30
  %v369 = vpop.permute.xlu0 %368
  %371 = vset.pattern.permute.xlu0 2
  %372 = vperm.xlu0 %371, %v31
  %v373 = vpop.permute.xlu0 %372
  %375 = vset.pattern.permute.xlu0 2
  %376 = vperm.xlu0 %375, %v32
  %v377 = vpop.permute.xlu0 %376
  %379 = vset.pattern.permute.xlu0 2
  %380 = vperm.xlu0 %379, %v33
  %v381 = vpop.permute.xlu0 %380
  %383 = vset.pattern.permute.xlu0 2
  %384 = vperm.xlu0 %383, %v34
  %v385 = vpop.permute.xlu0 %384
  %387 = vset.pattern.permute.xlu0 2
  %388 = vperm.xlu0 %387, %v35
  %v389 = vpop.permute.xlu0 %388
  %391 = vset.pattern.permute.xlu0 2
  %392 = vperm.xlu0 %391, %v36
  %v393 = vpop.permute.xlu0 %392
  %395 = vset.pattern.permute.xlu0 2
  %396 = vperm.xlu0 %395, %v37
  %v397 = vpop.permute.xlu0 %396
  %399 = vset.pattern.permute.xlu0 2
  %400 = vperm.xlu0 %399, %v38
  %v401 = vpop.permute.xlu0 %400
  %403 = vset.pattern.permute.xlu0 2
  %404 = vperm.xlu0 %403, %v39
  %v405 = vpop.permute.xlu0 %404
  %407 = vset.pattern.permute.xlu0 2
  %408 = vperm.xlu0 %407, %v40
  %v409 = vpop.permute.xlu0 %408
  %411 = vset.pattern.permute.xlu0 2
  %412 = vperm.xlu0 %411, %v41
  %v413 = vpop.permute.xlu0 %412
  %415 = vset.pattern.permute.xlu0 2
  %416 = vperm.xlu0 %415, %v42
  %v417 = vpop.permute.xlu0 %416
  %v419 = vlaneseq
  %v420 = vshrl.u32 %v419, 7
  %v421 = vsub.s32 2, %v420
  %v422 = vrot.slane %v26, %v421
  %v423 = vmul.f32 %v357, %v422
  %v424 = vmul.f32 %v361, %v422
  %v425 = vmul.f32 %v365, %v422
  %v426 = vmul.f32 %v369, %v422
  %v427 = vmul.f32 %v373, %v422
  %v428 = vmul.f32 %v377, %v422
  %v429 = vmul.f32 %v381, %v422
  %v430 = vmul.f32 %v385, %v422
  %v431 = vmul.f32 %v389, %v422
  %v432 = vmul.f32 %v393, %v422
  %v433 = vmul.f32 %v397, %v422
  %v434 = vmul.f32 %v401, %v422
  %v435 = vmul.f32 %v405, %v422
  %v436 = vmul.f32 %v409, %v422
  %v437 = vmul.f32 %v413, %v422
  %v438 = vmul.f32 %v417, %v422
  %v439 = vadd.f32 %v339, %v423
  %v440 = vadd.f32 %v340, %v424
  %v441 = vadd.f32 %v341, %v425
  %v442 = vadd.f32 %v342, %v426
  %v443 = vadd.f32 %v343, %v427
  %v444 = vadd.f32 %v344, %v428
  %v445 = vadd.f32 %v345, %v429
  %v446 = vadd.f32 %v346, %v430
  %v447 = vadd.f32 %v347, %v431
  %v448 = vadd.f32 %v348, %v432
  %v449 = vadd.f32 %v349, %v433
  %v450 = vadd.f32 %v350, %v434
  %v451 = vadd.f32 %v351, %v435
  %v452 = vadd.f32 %v352, %v436
  %v453 = vadd.f32 %v353, %v437
  %v454 = vadd.f32 %v354, %v438
  %455 = vset.pattern.permute.xlu0 3
  %456 = vperm.xlu0 %455, %v27
  %v457 = vpop.permute.xlu0 %456
  %459 = vset.pattern.permute.xlu0 3
  %460 = vperm.xlu0 %459, %v28
  %v461 = vpop.permute.xlu0 %460
  %463 = vset.pattern.permute.xlu0 3
  %464 = vperm.xlu0 %463, %v29
  %v465 = vpop.permute.xlu0 %464
  %467 = vset.pattern.permute.xlu0 3
  %468 = vperm.xlu0 %467, %v30
  %v469 = vpop.permute.xlu0 %468
  %471 = vset.pattern.permute.xlu0 3
  %472 = vperm.xlu0 %471, %v31
  %v473 = vpop.permute.xlu0 %472
  %475 = vset.pattern.permute.xlu0 3
  %476 = vperm.xlu0 %475, %v32
  %v477 = vpop.permute.xlu0 %476
  %479 = vset.pattern.permute.xlu0 3
  %480 = vperm.xlu0 %479, %v33
  %v481 = vpop.permute.xlu0 %480
  %483 = vset.pattern.permute.xlu0 3
  %484 = vperm.xlu0 %483, %v34
  %v485 = vpop.permute.xlu0 %484
  %487 = vset.pattern.permute.xlu0 3
  %488 = vperm.xlu0 %487, %v35
  %v489 = vpop.permute.xlu0 %488
  %491 = vset.pattern.permute.xlu0 3
  %492 = vperm.xlu0 %491, %v36
  %v493 = vpop.permute.xlu0 %492
  %495 = vset.pattern.permute.xlu0 3
  %496 = vperm.xlu0 %495, %v37
  %v497 = vpop.permute.xlu0 %496
  %499 = vset.pattern.permute.xlu0 3
  %500 = vperm.xlu0 %499, %v38
  %v501 = vpop.permute.xlu0 %500
  %503 = vset.pattern.permute.xlu0 3
  %504 = vperm.xlu0 %503, %v39
  %v505 = vpop.permute.xlu0 %504
  %507 = vset.pattern.permute.xlu0 3
  %508 = vperm.xlu0 %507, %v40
  %v509 = vpop.permute.xlu0 %508
  %511 = vset.pattern.permute.xlu0 3
  %512 = vperm.xlu0 %511, %v41
  %v513 = vpop.permute.xlu0 %512
  %515 = vset.pattern.permute.xlu0 3
  %516 = vperm.xlu0 %515, %v42
  %v517 = vpop.permute.xlu0 %516
  %v519 = vlaneseq
  %v520 = vshrl.u32 %v519, 7
  %v521 = vsub.s32 3, %v520
  %v522 = vrot.slane %v26, %v521
  %v523 = vmul.f32 %v457, %v522
  %v524 = vmul.f32 %v461, %v522
  %v525 = vmul.f32 %v465, %v522
  %v526 = vmul.f32 %v469, %v522
  %v527 = vmul.f32 %v473, %v522
  %v528 = vmul.f32 %v477, %v522
  %v529 = vmul.f32 %v481, %v522
  %v530 = vmul.f32 %v485, %v522
  %v531 = vmul.f32 %v489, %v522
  %v532 = vmul.f32 %v493, %v522
  %v533 = vmul.f32 %v497, %v522
  %v534 = vmul.f32 %v501, %v522
  %v535 = vmul.f32 %v505, %v522
  %v536 = vmul.f32 %v509, %v522
  %v537 = vmul.f32 %v513, %v522
  %v538 = vmul.f32 %v517, %v522
  %v539 = vadd.f32 %v439, %v523
  %v540 = vadd.f32 %v440, %v524
  %v541 = vadd.f32 %v441, %v525
  %v542 = vadd.f32 %v442, %v526
  %v543 = vadd.f32 %v443, %v527
  %v544 = vadd.f32 %v444, %v528
  %v545 = vadd.f32 %v445, %v529
  %v546 = vadd.f32 %v446, %v530
  %v547 = vadd.f32 %v447, %v531
  %v548 = vadd.f32 %v448, %v532
  %v549 = vadd.f32 %v449, %v533
  %v550 = vadd.f32 %v450, %v534
  %v551 = vadd.f32 %v451, %v535
  %v552 = vadd.f32 %v452, %v536
  %v553 = vadd.f32 %v453, %v537
  %v554 = vadd.f32 %v454, %v538
  %v555 = vmax.f32 %v539, 0.0
  %v556 = vmax.f32 %v540, 0.0
  %v557 = vmax.f32 %v541, 0.0
  %v558 = vmax.f32 %v542, 0.0
  %v559 = vmax.f32 %v543, 0.0
  %v560 = vmax.f32 %v544, 0.0
  %v561 = vmax.f32 %v545, 0.0
  %v562 = vmax.f32 %v546, 0.0
  %v563 = vmax.f32 %v547, 0.0
  %v564 = vmax.f32 %v548, 0.0
  %v565 = vmax.f32 %v549, 0.0
  %v566 = vmax.f32 %v550, 0.0
  %v567 = vmax.f32 %v551, 0.0
  %v568 = vmax.f32 %v552, 0.0
  %v569 = vmax.f32 %v553, 0.0
  %v570 = vmax.f32 %v554, 0.0
  %v571 = vld [vmem:[%s3] sm:$0xff]
  %v572 = vld [vmem:[%s3 + $0x8] sm:$0xff]
  %v573 = vld [vmem:[%s3 + $0x10] sm:$0xff]
  %v574 = vld [vmem:[%s3 + $0x18] sm:$0xff]
  %v575 = vld [vmem:[%s3 + $0x20] sm:$0xff]
  %v576 = vld [vmem:[%s3 + $0x28] sm:$0xff]
  %v577 = vld [vmem:[%s3 + $0x30] sm:$0xff]
  %v578 = vld [vmem:[%s3 + $0x38] sm:$0xff]
  %v579 = vld [vmem:[%s3 + $0x40] sm:$0xff]
  %v580 = vld [vmem:[%s3 + $0x48] sm:$0xff]
  %v581 = vld [vmem:[%s3 + $0x50] sm:$0xff]
  %v582 = vld [vmem:[%s3 + $0x58] sm:$0xff]
  %v583 = vld [vmem:[%s3 + $0x60] sm:$0xff]
  %v584 = vld [vmem:[%s3 + $0x68] sm:$0xff]
  %v585 = vld [vmem:[%s3 + $0x70] sm:$0xff]
  %v586 = vld [vmem:[%s3 + $0x78] sm:$0xff]
  %v587 = vld [vmem:[%s4] sm:$0xff]
  %v588 = vld [vmem:[%s4 + $0x8] sm:$0xff]
  %v589 = vld [vmem:[%s4 + $0x10] sm:$0xff]
  %v590 = vld [vmem:[%s4 + $0x18] sm:$0xff]
  %v591 = vld [vmem:[%s4 + $0x20] sm:$0xff]
  %v592 = vld [vmem:[%s4 + $0x28] sm:$0xff]
  %v593 = vld [vmem:[%s4 + $0x30] sm:$0xff]
  %v594 = vld [vmem:[%s4 + $0x38] sm:$0xff]
  %v595 = vld [vmem:[%s4 + $0x40] sm:$0xff]
  %v596 = vld [vmem:[%s4 + $0x48] sm:$0xff]
  %v597 = vld [vmem:[%s4 + $0x50] sm:$0xff]
  %v598 = vld [vmem:[%s4 + $0x58] sm:$0xff]
  %v599 = vld [vmem:[%s4 + $0x60] sm:$0xff]
  %v600 = vld [vmem:[%s4 + $0x68] sm:$0xff]
  %v601 = vld [vmem:[%s4 + $0x70] sm:$0xff]
  %v602 = vld [vmem:[%s4 + $0x78] sm:$0xff]
  %604 = vset.pattern.permute.xlu0 0
  %605 = vperm.xlu0 %604, %v587
  %v606 = vpop.permute.xlu0 %605
  %609 = vset.pattern.permute.xlu0 0
  %610 = vperm.xlu0 %609, %v588
  %v611 = vpop.permute.xlu0 %610
  %614 = vset.pattern.permute.xlu0 0
  %615 = vperm.xlu0 %614, %v589
  %v616 = vpop.permute.xlu0 %615
  %619 = vset.pattern.permute.xlu0 0
  %620 = vperm.xlu0 %619, %v590
  %v621 = vpop.permute.xlu0 %620
  %624 = vset.pattern.permute.xlu0 0
  %625 = vperm.xlu0 %624, %v591
  %v626 = vpop.permute.xlu0 %625
  %629 = vset.pattern.permute.xlu0 0
  %630 = vperm.xlu0 %629, %v592
  %v631 = vpop.permute.xlu0 %630
  %634 = vset.pattern.permute.xlu0 0
  %635 = vperm.xlu0 %634, %v593
  %v636 = vpop.permute.xlu0 %635
  %639 = vset.pattern.permute.xlu0 0
  %640 = vperm.xlu0 %639, %v594
  %v641 = vpop.permute.xlu0 %640
  %644 = vset.pattern.permute.xlu0 0
  %645 = vperm.xlu0 %644, %v595
  %v646 = vpop.permute.xlu0 %645
  %649 = vset.pattern.permute.xlu0 0
  %650 = vperm.xlu0 %649, %v596
  %v651 = vpop.permute.xlu0 %650
  %654 = vset.pattern.permute.xlu0 0
  %655 = vperm.xlu0 %654, %v597
  %v656 = vpop.permute.xlu0 %655
  %659 = vset.pattern.permute.xlu0 0
  %660 = vperm.xlu0 %659, %v598
  %v661 = vpop.permute.xlu0 %660
  %664 = vset.pattern.permute.xlu0 0
  %665 = vperm.xlu0 %664, %v599
  %v666 = vpop.permute.xlu0 %665
  %669 = vset.pattern.permute.xlu0 0
  %670 = vperm.xlu0 %669, %v600
  %v671 = vpop.permute.xlu0 %670
  %674 = vset.pattern.permute.xlu0 0
  %675 = vperm.xlu0 %674, %v601
  %v676 = vpop.permute.xlu0 %675
  %679 = vset.pattern.permute.xlu0 0
  %680 = vperm.xlu0 %679, %v602
  %v681 = vpop.permute.xlu0 %680
  %683 = vmatprep.subr.mxu0 0.0
  %684 = vmatpush1.msra.mxu0 %v570
  %685 = vmatprep.subr.mxu0 0.0
  %686 = vmatpush1.msra.mxu0 %v569
  %687 = vmatprep.subr.mxu0 0.0
  %688 = vmatpush1.msra.mxu0 %v568
  %689 = vmatprep.subr.mxu0 0.0
  %690 = vmatpush1.msra.mxu0 %v567
  %691 = vmatprep.subr.mxu0 0.0
  %692 = vmatpush1.msra.mxu0 %v566
  %693 = vmatprep.subr.mxu0 0.0
  %694 = vmatpush1.msra.mxu0 %v565
  %695 = vmatprep.subr.mxu0 0.0
  %696 = vmatpush1.msra.mxu0 %v564
  %697 = vmatprep.subr.mxu0 0.0
  %698 = vmatpush1.msra.mxu0 %v563
  %699 = vmatprep.subr.mxu0 0.0
  %700 = vmatpush1.msra.mxu0 %v562
  %701 = vmatprep.subr.mxu0 0.0
  %702 = vmatpush1.msra.mxu0 %v561
  %703 = vmatprep.subr.mxu0 0.0
  %704 = vmatpush1.msra.mxu0 %v560
  %705 = vmatprep.subr.mxu0 0.0
  %706 = vmatpush1.msra.mxu0 %v559
  %707 = vmatprep.subr.mxu0 0.0
  %708 = vmatpush1.msra.mxu0 %v558
  %709 = vmatprep.subr.mxu0 0.0
  %710 = vmatpush1.msra.mxu0 %v557
  %711 = vmatprep.subr.mxu0 0.0
  %712 = vmatpush1.msra.mxu0 %v556
  %713 = vmatprep.subr.mxu0 0.0
  %714 = vmatpush1.msra.mxu0 %v555
  %715 = vmatprep.subr.mxu0 0.0
  %716 = vmatpush2.msra.mxu0 0.0
  %717 = vmatprep.subr.mxu0 0.0
  %718 = vmatpush2.msra.mxu0 0.0
  %719 = vmatprep.subr.mxu0 0.0
  %720 = vmatpush2.msra.mxu0 0.0
  %721 = vmatprep.subr.mxu0 0.0
  %722 = vmatpush2.msra.mxu0 0.0
  %723 = vmatprep.subr.mxu0 0.0
  %724 = vmatpush2.msra.mxu0 0.0
  %725 = vmatprep.subr.mxu0 0.0
  %726 = vmatpush2.msra.mxu0 0.0
  %727 = vmatprep.subr.mxu0 0.0
  %728 = vmatpush2.msra.mxu0 0.0
  %729 = vmatprep.subr.mxu0 0.0
  %730 = vmatpush2.msra.mxu0 0.0
  %731 = vmatprep.subr.mxu0 0.0
  %732 = vmatpush2.msra.mxu0 0.0
  %733 = vmatprep.subr.mxu0 0.0
  %734 = vmatpush2.msra.mxu0 0.0
  %735 = vmatprep.subr.mxu0 0.0
  %736 = vmatpush2.msra.mxu0 0.0
  %737 = vmatprep.subr.mxu0 0.0
  %738 = vmatpush2.msra.mxu0 0.0
  %739 = vmatprep.subr.mxu0 0.0
  %740 = vmatpush2.msra.mxu0 0.0
  %741 = vmatprep.subr.mxu0 0.0
  %742 = vmatpush2.msra.mxu0 0.0
  %743 = vmatprep.subr.mxu0 0.0
  %744 = vmatpush2.msra.mxu0 0.0
  %745 = vmatprep.subr.mxu0 0.0
  %746 = vmatpush2.msra.mxu0 0.0
  %747 = vmatprep.mubr.f32.mxu0 0.0
  %748 = vmatmul.mubr.f32.gmra.mxu0 %v571
  %v749 = vpop.f32.mrf.mxu0
  %v750 = vadd.f32 %v606, %v749
  %v751 = vpop.f32.mrf.mxu0
  %752 = vmatprep.mubr.f32.mxu0 0.0
  %753 = vmatmul.mubr.f32.gmra.mxu0 %v572
  %v754 = vpop.f32.mrf.mxu0
  %v755 = vadd.f32 %v611, %v754
  %v756 = vpop.f32.mrf.mxu0
  %757 = vmatprep.mubr.f32.mxu0 0.0
  %758 = vmatmul.mubr.f32.gmra.mxu0 %v573
  %v759 = vpop.f32.mrf.mxu0
  %v760 = vadd.f32 %v616, %v759
  %v761 = vpop.f32.mrf.mxu0
  %762 = vmatprep.mubr.f32.mxu0 0.0
  %763 = vmatmul.mubr.f32.gmra.mxu0 %v574
  %v764 = vpop.f32.mrf.mxu0
  %v765 = vadd.f32 %v621, %v764
  %v766 = vpop.f32.mrf.mxu0
  %767 = vmatprep.mubr.f32.mxu0 0.0
  %768 = vmatmul.mubr.f32.gmra.mxu0 %v575
  %v769 = vpop.f32.mrf.mxu0
  %v770 = vadd.f32 %v626, %v769
  %v771 = vpop.f32.mrf.mxu0
  %772 = vmatprep.mubr.f32.mxu0 0.0
  %773 = vmatmul.mubr.f32.gmra.mxu0 %v576
  %v774 = vpop.f32.mrf.mxu0
  %v775 = vadd.f32 %v631, %v774
  %v776 = vpop.f32.mrf.mxu0
  %777 = vmatprep.mubr.f32.mxu0 0.0
  %778 = vmatmul.mubr.f32.gmra.mxu0 %v577
  %v779 = vpop.f32.mrf.mxu0
  %v780 = vadd.f32 %v636, %v779
  %v781 = vpop.f32.mrf.mxu0
  %782 = vmatprep.mubr.f32.mxu0 0.0
  %783 = vmatmul.mubr.f32.gmra.mxu0 %v578
  %v784 = vpop.f32.mrf.mxu0
  %v785 = vadd.f32 %v641, %v784
  %v786 = vpop.f32.mrf.mxu0
  %787 = vmatprep.mubr.f32.mxu0 0.0
  %788 = vmatmul.mubr.f32.gmra.mxu0 %v579
  %v789 = vpop.f32.mrf.mxu0
  %v790 = vadd.f32 %v646, %v789
  %v791 = vpop.f32.mrf.mxu0
  %792 = vmatprep.mubr.f32.mxu0 0.0
  %793 = vmatmul.mubr.f32.gmra.mxu0 %v580
  %v794 = vpop.f32.mrf.mxu0
  %v795 = vadd.f32 %v651, %v794
  %v796 = vpop.f32.mrf.mxu0
  %797 = vmatprep.mubr.f32.mxu0 0.0
  %798 = vmatmul.mubr.f32.gmra.mxu0 %v581
  %v799 = vpop.f32.mrf.mxu0
  %v800 = vadd.f32 %v656, %v799
  %v801 = vpop.f32.mrf.mxu0
  %802 = vmatprep.mubr.f32.mxu0 0.0
  %803 = vmatmul.mubr.f32.gmra.mxu0 %v582
  %v804 = vpop.f32.mrf.mxu0
  %v805 = vadd.f32 %v661, %v804
  %v806 = vpop.f32.mrf.mxu0
  %807 = vmatprep.mubr.f32.mxu0 0.0
  %808 = vmatmul.mubr.f32.gmra.mxu0 %v583
  %v809 = vpop.f32.mrf.mxu0
  %v810 = vadd.f32 %v666, %v809
  %v811 = vpop.f32.mrf.mxu0
  %812 = vmatprep.mubr.f32.mxu0 0.0
  %813 = vmatmul.mubr.f32.gmra.mxu0 %v584
  %v814 = vpop.f32.mrf.mxu0
  %v815 = vadd.f32 %v671, %v814
  %v816 = vpop.f32.mrf.mxu0
  %817 = vmatprep.mubr.f32.mxu0 0.0
  %818 = vmatmul.mubr.f32.gmra.mxu0 %v585
  %v819 = vpop.f32.mrf.mxu0
  %v820 = vadd.f32 %v676, %v819
  %v821 = vpop.f32.mrf.mxu0
  %822 = vmatprep.mubr.f32.mxu0 0.0
  %823 = vmatmul.mubr.f32.gmra.mxu0 %v586
  %v824 = vpop.f32.mrf.mxu0
  %v825 = vadd.f32 %v681, %v824
  %v826 = vpop.f32.mrf.mxu0
  %827 = vdwg.mxu0
  %v828 = vmax.f32 %v750, 0.0
  %v829 = vmax.f32 %v755, 0.0
  %v830 = vmax.f32 %v760, 0.0
  %v831 = vmax.f32 %v765, 0.0
  %v832 = vmax.f32 %v770, 0.0
  %v833 = vmax.f32 %v775, 0.0
  %v834 = vmax.f32 %v780, 0.0
  %v835 = vmax.f32 %v785, 0.0
  %v836 = vmax.f32 %v790, 0.0
  %v837 = vmax.f32 %v795, 0.0
  %v838 = vmax.f32 %v800, 0.0
  %v839 = vmax.f32 %v805, 0.0
  %v840 = vmax.f32 %v810, 0.0
  %v841 = vmax.f32 %v815, 0.0
  %v842 = vmax.f32 %v820, 0.0
  %v843 = vmax.f32 %v825, 0.0
  %v844 = vld [vmem:[%s5] sm:$0xff]
  %v845 = vld [vmem:[%s6] sm:$0xff]
  %847 = vset.pattern.permute.xlu0 0
  %848 = vperm.xlu0 %847, %v845
  %v849 = vpop.permute.xlu0 %848
  %851 = vmatprep.subr.mxu0 0.0
  %852 = vmatpush1.msra.mxu0 %v843
  %853 = vmatprep.subr.mxu0 0.0
  %854 = vmatpush1.msra.mxu0 %v842
  %855 = vmatprep.subr.mxu0 0.0
  %856 = vmatpush1.msra.mxu0 %v841
  %857 = vmatprep.subr.mxu0 0.0
  %858 = vmatpush1.msra.mxu0 %v840
  %859 = vmatprep.subr.mxu0 0.0
  %860 = vmatpush1.msra.mxu0 %v839
  %861 = vmatprep.subr.mxu0 0.0
  %862 = vmatpush1.msra.mxu0 %v838
  %863 = vmatprep.subr.mxu0 0.0
  %864 = vmatpush1.msra.mxu0 %v837
  %865 = vmatprep.subr.mxu0 0.0
  %866 = vmatpush1.msra.mxu0 %v836
  %867 = vmatprep.subr.mxu0 0.0
  %868 = vmatpush1.msra.mxu0 %v835
  %869 = vmatprep.subr.mxu0 0.0
  %870 = vmatpush1.msra.mxu0 %v834
  %871 = vmatprep.subr.mxu0 0.0
  %872 = vmatpush1.msra.mxu0 %v833
  %873 = vmatprep.subr.mxu0 0.0
  %874 = vmatpush1.msra.mxu0 %v832
  %875 = vmatprep.subr.mxu0 0.0
  %876 = vmatpush1.msra.mxu0 %v831
  %877 = vmatprep.subr.mxu0 0.0
  %878 = vmatpush1.msra.mxu0 %v830
  %879 = vmatprep.subr.mxu0 0.0
  %880 = vmatpush1.msra.mxu0 %v829
  %881 = vmatprep.subr.mxu0 0.0
  %882 = vmatpush1.msra.mxu0 %v828
  %883 = vmatprep.subr.mxu0 0.0
  %884 = vmatpush2.msra.mxu0 0.0
  %885 = vmatprep.subr.mxu0 0.0
  %886 = vmatpush2.msra.mxu0 0.0
  %887 = vmatprep.subr.mxu0 0.0
  %888 = vmatpush2.msra.mxu0 0.0
  %889 = vmatprep.subr.mxu0 0.0
  %890 = vmatpush2.msra.mxu0 0.0
  %891 = vmatprep.subr.mxu0 0.0
  %892 = vmatpush2.msra.mxu0 0.0
  %893 = vmatprep.subr.mxu0 0.0
  %894 = vmatpush2.msra.mxu0 0.0
  %895 = vmatprep.subr.mxu0 0.0
  %896 = vmatpush2.msra.mxu0 0.0
  %897 = vmatprep.subr.mxu0 0.0
  %898 = vmatpush2.msra.mxu0 0.0
  %899 = vmatprep.subr.mxu0 0.0
  %900 = vmatpush2.msra.mxu0 0.0
  %901 = vmatprep.subr.mxu0 0.0
  %902 = vmatpush2.msra.mxu0 0.0
  %903 = vmatprep.subr.mxu0 0.0
  %904 = vmatpush2.msra.mxu0 0.0
  %905 = vmatprep.subr.mxu0 0.0
  %906 = vmatpush2.msra.mxu0 0.0
  %907 = vmatprep.subr.mxu0 0.0
  %908 = vmatpush2.msra.mxu0 0.0
  %909 = vmatprep.subr.mxu0 0.0
  %910 = vmatpush2.msra.mxu0 0.0
  %911 = vmatprep.subr.mxu0 0.0
  %912 = vmatpush2.msra.mxu0 0.0
  %913 = vmatprep.subr.mxu0 0.0
  %914 = vmatpush2.msra.mxu0 0.0
  %915 = vmatprep.mubr.f32.mxu0 0.0
  %916 = vmatmul.mubr.f32.gmra.mxu0 %v844
  %v917 = vpop.f32.mrf.mxu0
  %v918 = vadd.f32 %v849, %v917
  %v919 = vpop.f32.mrf.mxu0
  %920 = vdwg.mxu0
  %921 = vst [vmem:[%s7] sm:$0xff] %v918
  // Predicated region
  $region30: #{neural_network_forward.1} parent=0 // pred_check
    _
  $region31: #{neural_network_forward.1} parent=0 // pred_check_branch
    %923 = sbr.rel (0) target = $region33
  $region32: #{neural_network_forward.1} parent=0 // pred_region
    _
  $region33: #{neural_network_forward.1} parent=0 // pred_fallthru
    _
  // Predicated region
  $region34: #{neural_network_forward.1} parent=0 // pred_check
    _
  $region35: #{neural_network_forward.1} parent=0 // pred_check_branch
    %925 = sbr.rel (0) target = $region37
  $region36: #{neural_network_forward.1} parent=0 // pred_region
    _
  $region37: #{neural_network_forward.1} parent=0 // pred_fallthru
    _

</llo_original>
